<compile_context>
chip_gen: v6e
topology: v6e:2x2x1
jax: 0.10.0
libtpu: 0.0.40
codegen_flags: <defaults>
</compile_context>

<pallas_src>
import functools

import jax
import jax.numpy as jnp
from jax.experimental import pallas as pl
from jax.experimental.pallas import tpu as pltpu

LANE = 128
_TARGET_TILE_BYTES = 4 * 1024 * 1024     # per input ref, per pipeline buffer
_VMEM_LIMIT_BYTES = 28 * 1024 * 1024     # 3 refs x 2 bufs x 4 MiB = 24 MiB + slack


def _soft_thresh_kernel(c_ref, b_ref, q_ref, *, th: float):
    # Q = sign(d) * max(|d| - th, 0)  ==  d - clip(d, -th, th)   (bit-identical)
    d = c_ref[...] - b_ref[...]
    q_ref[...] = d - jnp.clip(d, -th, th)


def _num_tensorcores_per_device() -> int:
    """2 on megacore devices (v4 / v5p / v7x), else 1. Heuristic on device_kind."""
    try:
        kind = jax.devices()[0].device_kind.lower()
    except Exception:
        return 1
    if ("v7" in kind) or ("v4" in kind) or ("v5p" in kind):
        return 2
    return 1


def _pick_tile(n_units, bytes_per_unit, unit_align, num_tc, target_tile_bytes):
    """Tile size in `units` (rows for 2-D slab, elements for 1-D path)."""
    total_bytes = n_units * bytes_per_unit
    n_steps = max(1, pl.cdiv(total_bytes, target_tile_bytes))
    if num_tc >= 2 and total_bytes > (1 << 20):
        # Both TensorCores must get work: at least 2 steps, even count.
        n_steps = max(n_steps, 2)
        if n_steps % 2:
            n_steps += 1
    tile = pl.cdiv(n_units, n_steps)
    tile = pl.cdiv(tile, unit_align) * unit_align
    if tile >= n_units:
        tile = n_units  # full-extent block (always legal)
    return tile


def soft_thresholding(C, beta, *, rho: float, lamb: float,
                      min_pallas_bytes: int = 256 * 1024):
    """Pallas implementation of SoftThresholding.forward(C, beta)."""
    assert C.shape == beta.shape, "C and beta must have identical shapes"
    orig_shape = C.shape
    dtype = C.dtype
    th = float(lamb) / float(rho)

    total = C.size
    itemsize = jnp.dtype(dtype).itemsize
    total_bytes = total * itemsize

    # Tiny inputs: launch + DMA setup dominates; let XLA fuse the elementwise op.
    if total == 0 or total_bytes < min_pallas_bytes:
        d = C - beta
        return (d - jnp.clip(d, -th, th)).astype(dtype)

    # Minimum sublane tile by dtype packing: f32 -> 8, bf16 -> 16, int8/fp8 -> 32.
    min_sublane = {4: 8, 2: 16, 1: 32}.get(itemsize, 8)
    num_tc = _num_tensorcores_per_device()
    kernel = functools.partial(_soft_thresh_kernel, th=th)
    compiler_params = pltpu.CompilerParams(
        dimension_semantics=("parallel",),
        vmem_limit_bytes=_VMEM_LIMIT_BYTES,
    )

    if total % LANE == 0:
        # Lane-dense 2-D slab: wide W -> unmasked wide `vst` + large DMA descriptors.
        W = LANE
        for w in (1024, 512, 256, LANE):
            if total % w == 0:
                W = w
                break
        rows = total // W
        c2 = C.reshape(rows, W)
        b2 = beta.reshape(rows, W)
        tm = _pick_tile(rows, W * itemsize, min_sublane, num_tc, _TARGET_TILE_BYTES)
        grid = (pl.cdiv(rows, tm),)
        q = pl.pallas_call(
            kernel,
            out_shape=jax.ShapeDtypeStruct((rows, W), dtype),
            grid_spec=pltpu.PrefetchScalarGridSpec(
                num_scalar_prefetch=0,
                grid=grid,
                in_specs=[
                    pl.BlockSpec((tm, W), lambda i: (i, 0)),
                    pl.BlockSpec((tm, W), lambda i: (i, 0)),
                ],
                out_specs=pl.BlockSpec((tm, W), lambda i: (i, 0)),
            ),
            compiler_params=compiler_params,
        )(c2, b2)
        return q.reshape(orig_shape)

    # Ragged case (element count not a multiple of 128): run directly on the flat
    # 1-D view. No jnp.pad / output slice -> no extra HBM passes. Blocks are
    # multiples of min_sublane*128 (or full-extent); the final partial block is
    # clipped by Pallas, which is safe for a purely elementwise kernel.
    c1 = C.reshape(total)
    b1 = beta.reshape(total)
    blk = _pick_tile(total, itemsize, min_sublane * LANE, num_tc, _TARGET_TILE_BYTES)
    grid = (pl.cdiv(total, blk),)
    q = pl.pallas_call(
        kernel,
        out_shape=jax.ShapeDtypeStruct((total,), dtype),
        grid_spec=pltpu.PrefetchScalarGridSpec(
            num_scalar_prefetch=0,
            grid=grid,
            in_specs=[
                pl.BlockSpec((blk,), lambda i: (i,)),
                pl.BlockSpec((blk,), lambda i: (i,)),
            ],
            out_specs=pl.BlockSpec((blk,), lambda i: (i,)),
        ),
        compiler_params=compiler_params,
    )(c1, b1)
    return q.reshape(orig_shape)


def soft_thresholding_ref(C, beta, *, rho: float, lamb: float):
    """Pure-JAX reference matching the PyTorch module exactly."""
    th = lamb / rho
    d = C - beta
    mask = (jnp.abs(d) >= th).astype(d.dtype)
    return (d - th * jnp.sign(d)) * mask


if __name__ == "__main__":
    rho, lamb = 1.0, 0.1
    key = jax.random.PRNGKey(0)
    ks = jax.random.split(key, 8)

    # (A) Module-scale small case (batch=2, channels=4, 16x16); force the Pallas path.
    C = jax.random.normal(ks[0], (2, 4, 16, 16), dtype=jnp.float32)
    B = jax.random.normal(ks[1], (2, 4, 16, 16), dtype=jnp.float32)
    Q = jax.block_until_ready(
        soft_thresholding(C, B, rho=rho, lamb=lamb, min_pallas_bytes=0))
    assert Q.shape == C.shape and Q.dtype == C.dtype
    assert jnp.allclose(Q, soft_thresholding_ref(C, B, rho=rho, lamb=lamb),
                        atol=1e-6, rtol=1e-6), "mismatch (small aligned)"

    # (B) Larger aligned case -> wide lane-dense 2-D slab Pallas path.
    C = jax.random.normal(ks[2], (2, 4, 128, 128), dtype=jnp.float32)
    B = jax.random.normal(ks[3], (2, 4, 128, 128), dtype=jnp.float32)
    Q = jax.block_until_ready(soft_thresholding(C, B, rho=rho, lamb=lamb))
    assert jnp.allclose(Q, soft_thresholding_ref(C, B, rho=rho, lamb=lamb),
                        atol=1e-6, rtol=1e-6), "mismatch (aligned)"

    # (C) Ragged case (element count not a multiple of 128) -> 1-D Pallas path,
    #     no pad / slice HBM passes.
    C = jax.random.normal(ks[4], (3, 5, 67, 67), dtype=jnp.float32)
    B = jax.random.normal(ks[5], (3, 5, 67, 67), dtype=jnp.float32)
    Q = jax.block_until_ready(soft_thresholding(C, B, rho=rho, lamb=lamb))
    assert Q.shape == C.shape and Q.dtype == C.dtype
    assert jnp.allclose(Q, soft_thresholding_ref(C, B, rho=rho, lamb=lamb),
                        atol=1e-6, rtol=1e-6), "mismatch (ragged)"

    # (D) Tiny ragged case -> pure-JAX fallback (launch overhead not worth it).
    C = jax.random.normal(ks[6], (3, 5, 7, 11), dtype=jnp.float32)
    B = jax.random.normal(ks[7], (3, 5, 7, 11), dtype=jnp.float32)
    Q = jax.block_until_ready(soft_thresholding(C, B, rho=rho, lamb=lamb))
    assert jnp.allclose(Q, soft_thresholding_ref(C, B, rho=rho, lamb=lamb),
                        atol=1e-6, rtol=1e-6), "mismatch (tiny fallback)"

    print("KERNEL_OK")
</pallas_src>

<mosaic_0001>
module attributes {stable_mosaic.version = 11 : i64} {
  func.func @_soft_thresh_kernel(%arg0: i32, %arg1: memref<2x1024xf32, #tpu.memory_space<vmem>>, %arg2: memref<2x1024xf32, #tpu.memory_space<vmem>>, %arg3: memref<2x1024xf32, #tpu.memory_space<vmem>>) attributes {dimension_semantics = [#tpu.dimension_semantics<parallel>], iteration_bounds = array<i64: 1>, scalar_prefetch = 0 : i64, scratch_operands = 0 : i64, tpu.core_type = #tpu.core_type<tc>, window_params = [{transform_indices = @transform_0, window_bounds = array<i64: 2, 1024>}, {transform_indices = @transform_1, window_bounds = array<i64: 2, 1024>}, {transform_indices = @transform_2, window_bounds = array<i64: 2, 1024>}]} {
    %c0 = arith.constant 0 : index
    %c0_0 = arith.constant 0 : index
    %0 = vector.load %arg1[%c0, %c0_0] : memref<2x1024xf32, #tpu.memory_space<vmem>>, vector<2x1024xf32>
    %c0_1 = arith.constant 0 : index
    %c0_2 = arith.constant 0 : index
    %1 = vector.load %arg2[%c0_1, %c0_2] : memref<2x1024xf32, #tpu.memory_space<vmem>>, vector<2x1024xf32>
    %2 = arith.subf %0, %1 : vector<2x1024xf32>
    %cst = arith.constant -1.000000e-01 : f32
    %cst_3 = arith.constant 1.000000e-01 : f32
    %3 = vector.broadcast %cst : f32 to vector<2x1024xf32>
    %4 = arith.maximumf %3, %2 : vector<2x1024xf32>
    %5 = vector.broadcast %cst_3 : f32 to vector<2x1024xf32>
    %6 = arith.minimumf %5, %4 : vector<2x1024xf32>
    %7 = arith.subf %2, %6 : vector<2x1024xf32>
    %c0_4 = arith.constant 0 : index
    %c0_5 = arith.constant 0 : index
    %8 = vector.load %arg3[%c0_4, %c0_5] : memref<2x1024xf32, #tpu.memory_space<vmem>>, vector<2x1024xf32>
    tpu.vector_store %arg3[%c0_4, %c0_5], %7 {strides = array<i32>} : memref<2x1024xf32, #tpu.memory_space<vmem>>, vector<2x1024xf32>,
    return
  }
  func.func @transform_0(%arg0: i32) -> (i32, i32) {
    %c0_i32 = arith.constant 0 : i32
    %c0_i32_0 = arith.constant 0 : i32
    return %arg0, %c0_i32 : i32, i32
  }
  func.func @transform_1(%arg0: i32) -> (i32, i32) {
    %c0_i32 = arith.constant 0 : i32
    %c0_i32_0 = arith.constant 0 : i32
    return %arg0, %c0_i32 : i32, i32
  }
  func.func @transform_2(%arg0: i32) -> (i32, i32) {
    %c0_i32 = arith.constant 0 : i32
    %c0_i32_0 = arith.constant 0 : i32
    return %arg0, %c0_i32 : i32, i32
  }
}

</mosaic_0001>

<llo_original>
// kernel: tpu_custom_call.1
$region0: #{tpu_custom_call.1}
  #allocation0 [shape = 'u32[]', space=smem, size = 0x4, offset = 0x4, fixed_abs, tag = 'smem constant byte address 0x4 - core index']
  #allocation1 [shape = 'u32[144,128]{1,0:T(1,128)}', space=vmem, size = 0x12000, scoped, tag = 'internal scratch']
  %s0 = inlined_call_operand.hbm [shape: f32[2,1024], index: 0, kind: input, shape index: {}]
  %s1 = inlined_call_operand.hbm [shape: f32[2,1024], index: 1, kind: input, shape index: {}]
  %s2 = inlined_call_operand.hbm [shape: f32[2,1024], index: 2, kind: output, shape index: {}]
  %s3 = sld [smem:[#allocation0]]
  $region26: #{tpu_custom_call.1} parent=0
    _
  %s5 = ssub.s32 1, %s3
  %s6 = scalar_select 0, %s5, %s3
  $region1: #{tpu_custom_call.1} parent=0
    #allocation2 [shape = 'u8[8192]{0}', space=vmem, size = 0x2000, scoped, tag = 'input window, operand 0, single buffered']
    #allocation3 [shape = 's32[1]{0}', space=sflag, size = 0x4, scoped, tag = 'scoped memory for tpu_custom_call.1']
    #allocation4 [shape = 's32[1]{0}', space=sflag, size = 0x4, scoped, tag = 'scoped memory for tpu_custom_call.1']
    #allocation5 [shape = 'u8[8192]{0}', space=vmem, size = 0x2000, scoped, tag = 'input window, operand 1, single buffered']
    #allocation6 [shape = 's32[1]{0}', space=sflag, size = 0x4, scoped, tag = 'scoped memory for tpu_custom_call.1']
    #allocation7 [shape = 'u8[8192]{0}', space=vmem, size = 0x2000, scoped, tag = 'output window, operand 0, single buffered']
    %7 = vsyncpa [#allocation3], 0
    %8 = vsyncpa [#allocation6], 0
    %9 = vsyncpa [#allocation4], 0
    // Predicated region
    $region2: #{tpu_custom_call.1} parent=1 // pred_check
      _
    $region3: #{tpu_custom_call.1} parent=1 // pred_check_branch
      %11 = sbr.rel (0) target = $region5
    $region4: #{tpu_custom_call.1} parent=1 // pred_region
      %s13 = ssub.s32 256, 256
      %14 = vsyncadd [#allocation3], %s13
      %s16 = sshll.u32 [#allocation2], 4
      %s17 = int_to_ptr.vmem [resolvable:$true] %s16
      %19 = dma.hbm_to_vmem [thread:$0]  %s0, 256, %s17, [#allocation3]
    $region5: #{tpu_custom_call.1} parent=1 // pred_fallthru
      _
    // Predicated region
    $region6: #{tpu_custom_call.1} parent=1 // pred_check
      _
    $region7: #{tpu_custom_call.1} parent=1 // pred_check_branch
      %21 = sbr.rel (0) target = $region9
    $region8: #{tpu_custom_call.1} parent=1 // pred_region
      %s23 = ssub.s32 256, 256
      %24 = vsyncadd [#allocation6], %s23
      %s26 = sshll.u32 [#allocation5], 4
      %s27 = int_to_ptr.vmem [resolvable:$true] %s26
      %29 = dma.hbm_to_vmem [thread:$0]  %s1, 256, %s27, [#allocation6]
    $region9: #{tpu_custom_call.1} parent=1 // pred_fallthru
      _
    // Predicated region
    $region10: #{tpu_custom_call.1} parent=1 // pred_check
      _
    $region11: #{tpu_custom_call.1} parent=1 // pred_check_branch
      %31 = sbr.rel (0) target = $region13
    $region12: #{tpu_custom_call.1} parent=1 // pred_region
      %32 = dma.done [#allocation3], 256
    $region13: #{tpu_custom_call.1} parent=1 // pred_fallthru
      _
    // Predicated region
    $region14: #{tpu_custom_call.1} parent=1 // pred_check
      _
    $region15: #{tpu_custom_call.1} parent=1 // pred_check_branch
      %34 = sbr.rel (0) target = $region17
    $region16: #{tpu_custom_call.1} parent=1 // pred_region
      %35 = dma.done [#allocation6], 256
    $region17: #{tpu_custom_call.1} parent=1 // pred_fallthru
      _
    %v36 = vld [vmem:[#allocation2] sm:$0xff]
    %v37 = vld [vmem:[#allocation2 + $0x8] sm:$0xff]
    %v38 = vld [vmem:[#allocation5] sm:$0xff]
    %v39 = vld [vmem:[#allocation5 + $0x8] sm:$0xff]
    %v40 = vsub.f32 %v36, %v38
    %v41 = vsub.f32 %v37, %v39
    %v42 = vmax.f32 %v40, -0.1
    %v43 = vmax.f32 %v41, -0.1
    %v44 = vmin.f32 %v42, 0.1
    %v45 = vmin.f32 %v43, 0.1
    %v46 = vsub.f32 %v40, %v44
    %v47 = vsub.f32 %v41, %v45
    %48 = vst [vmem:[#allocation7] sm:$0xff] %v46
    %49 = vst [vmem:[#allocation7 + $0x8] sm:$0xff] %v47
    // Predicated region
    $region18: #{tpu_custom_call.1} parent=1 // pred_check
      _
    $region19: #{tpu_custom_call.1} parent=1 // pred_check_branch
      %51 = sbr.rel (0) target = $region21
    $region20: #{tpu_custom_call.1} parent=1 // pred_region
      %s53 = ssub.s32 256, 256
      %54 = vsyncadd [#allocation4], %s53
      %s56 = sshll.u32 [#allocation7], 4
      %s57 = int_to_ptr.vmem [resolvable:$true] %s56
      %59 = dma.vmem_to_hbm [thread:$0]  %s57, 256, %s2, [#allocation4]
    $region21: #{tpu_custom_call.1} parent=1 // pred_fallthru
      _
    // Predicated region
    $region22: #{tpu_custom_call.1} parent=1 // pred_check
      _
    $region23: #{tpu_custom_call.1} parent=1 // pred_check_branch
      %61 = sbr.rel (0) target = $region25
    $region24: #{tpu_custom_call.1} parent=1 // pred_region
      %62 = dma.done [#allocation4], 256
    $region25: #{tpu_custom_call.1} parent=1 // pred_fallthru
      _
    %63 = vsyncpa [#allocation3], 1
    %64 = vsyncpa [#allocation6], 1
    %65 = vsyncpa [#allocation4], 1

</llo_original>
